<compile_context>
chip_gen: v7x
topology: tpu7x:2x2x1
jax: 0.10.0
libtpu: 0.0.40
codegen_flags: <defaults>
</compile_context>

<pallas_src>
import functools

import jax
import jax.numpy as jnp
from jax.experimental import pallas as pl
from jax.experimental.pallas import tpu as pltpu


def _round_up(n: int, m: int) -> int:
    return ((n + m - 1) // m) * m


def _sublane(dtype) -> int:
    return {4: 8, 2: 16, 1: 32}.get(jnp.dtype(dtype).itemsize, 8)


def _mlp_kernel(x_ref, w1_ref, b1_ref, w2_ref, b2_ref, out_ref):
    # x_ref:  (tm, H)     w1_ref: (H, H2p)    b1_ref: (1, H2p)
    # w2_ref: (H2p, T)    b2_ref: (1, T)      out_ref: (tm, T)
    h = jnp.dot(x_ref[...], w1_ref[...], preferred_element_type=jnp.float32)
    h = jnp.maximum(h + b1_ref[...], 0.0)                    # bias + ReLU (f32)
    # TODO(synk): training-mode dropout (pltpu.prng_seed + pltpu.prng_random_bits
    # mask on the (tm, H2p) hidden tile) not implemented; eval-mode dropout is
    # the identity, which is what we compute.
    y = jnp.dot(h.astype(w2_ref.dtype), w2_ref[...],
                preferred_element_type=jnp.float32)
    out_ref[...] = (y + b2_ref[...]).astype(out_ref.dtype)


def prepare_params(w1, b1, w2, b2):
    """One-time parameter prep (call once, outside the per-step path).

    Pads the hidden width H//2 up to a lane multiple of 128 with zeros (exact:
    zero columns/rows contribute nothing through ReLU / the second matmul) and
    reshapes biases to 2-D rows.  The tag dimension T is NOT padded: for small
    heads a padded writeback would dominate HBM traffic.
    """
    H, H2 = w1.shape
    T = w2.shape[1]
    H2p = _round_up(max(H2, 1), 128)
    if H2p == H2:
        w1p, w2p = w1, w2
        b1p = b1.reshape(1, H2)
    else:
        w1p = jnp.zeros((H, H2p), w1.dtype).at[:, :H2].set(w1)
        b1p = jnp.zeros((1, H2p), b1.dtype).at[0, :H2].set(b1)
        w2p = jnp.zeros((H2p, T), w2.dtype).at[:H2, :].set(w2)
    b2p = b2.reshape(1, T)
    return w1p, b1p, w2p, b2p


def _choose_block_m(M, H, itemsize, *, target_bytes=2 << 20, min_steps=4):
    """Token-tile height: ~target_bytes of x per step (so DMA dominates the
    ~0.35 us per-grid-step overhead), capped so the grid keeps >= min_steps
    steps when M allows (pipeline depth + v7x 2-TC sharding)."""
    sub = {4: 8, 2: 16, 1: 32}.get(itemsize, 8)
    tm = max(sub, (target_bytes // max(H * itemsize, 1)) // sub * sub)
    cap = max(sub, _round_up(pl.cdiv(M, min_steps), sub))
    tm = min(tm, cap)
    tm = min(tm, _round_up(M, sub))
    return int(tm)


@functools.partial(jax.jit, static_argnames=("block_m",))
def multi_nonlinear_classifier(x, w1p, b1p, w2p, b2p, *, block_m=None):
    """Fused 2-layer MLP head: relu(x @ W1 + b1) @ W2 + b2.

    x:   (M, H)
    w1p: (H, H2p)   b1p: (1, H2p)     -- from prepare_params()
    w2p: (H2p, T)   b2p: (1, T)
    returns (M, T)
    """
    M, H = x.shape
    H2p = w1p.shape[1]
    T = w2p.shape[1]
    itemsize = jnp.dtype(x.dtype).itemsize
    sub = _sublane(x.dtype)

    if block_m is None:
        tm = _choose_block_m(M, H, itemsize)
    else:
        tm = max(sub, (int(block_m) // sub) * sub)   # round to sublane multiple
        tm = min(tm, _round_up(M, sub))
    grid = (pl.cdiv(M, tm),)   # ragged last block is fine: rows are independent

    # Grid-invariant operands: single-buffer them only when they are big enough
    # that the saved VMEM matters (frees room for larger x tiles, esp. on v7x).
    resident_bytes = sum(int(a.size) * jnp.dtype(a.dtype).itemsize
                         for a in (w1p, b1p, w2p, b2p))
    weight_mode = pl.Buffered(1) if resident_bytes > (4 << 20) else None

    out = pl.pallas_call(
        _mlp_kernel,
        out_shape=jax.ShapeDtypeStruct((M, T), x.dtype),
        grid=grid,
        in_specs=[
            pl.BlockSpec((tm, H), lambda i: (i, 0)),        # x: pipelined tiles
            pl.BlockSpec((H, H2p), lambda i: (0, 0), pipeline_mode=weight_mode),
            pl.BlockSpec((1, H2p), lambda i: (0, 0), pipeline_mode=weight_mode),
            pl.BlockSpec((H2p, T), lambda i: (0, 0), pipeline_mode=weight_mode),
            pl.BlockSpec((1, T), lambda i: (0, 0), pipeline_mode=weight_mode),
        ],
        out_specs=pl.BlockSpec((tm, T), lambda i: (i, 0)),  # true-width output
        compiler_params=pltpu.CompilerParams(
            dimension_semantics=("parallel",),
            # Raise v5e's 16 MiB scoped default; stays within v7x's 64 MiB
            # physical VMEM.  Actual per-step footprint is far smaller.
            vmem_limit_bytes=64 * 1024 * 1024,
        ),
    )(x, w1p, b1p, w2p, b2p)
    return out


def _ref_forward(x, w1, b1, w2, b2):
    h = jnp.maximum(x @ w1 + b1, 0.0)
    return h @ w2 + b2


if __name__ == "__main__":
    # Module config (SMALL): hidden_size=32 -> intermediate 16, tag_size=8.
    batch, seq, hidden, tag_size = 2, 8, 32, 8
    hidden2 = hidden // 2

    key = jax.random.PRNGKey(0)
    kx, kw1, kb1, kw2, kb2 = jax.random.split(key, 5)

    # Input features: (batch, seq, hidden) -> flatten token axis for the kernel.
    x = jax.random.normal(kx, (batch, seq, hidden), dtype=jnp.float32)
    x2d = x.reshape(batch * seq, hidden)

    # Deterministic parameter init (PyTorch Linear-style uniform bounds).
    lim1 = 1.0 / jnp.sqrt(hidden)
    w1 = jax.random.uniform(kw1, (hidden, hidden2), jnp.float32, -lim1, lim1)
    b1 = jax.random.uniform(kb1, (hidden2,), jnp.float32, -lim1, lim1)
    lim2 = 1.0 / jnp.sqrt(hidden2)
    w2 = jax.random.uniform(kw2, (hidden2, tag_size), jnp.float32, -lim2, lim2)
    b2 = jax.random.uniform(kb2, (tag_size,), jnp.float32, -lim2, lim2)

    # One-time parameter prep (padding hoisted out of the per-call path).
    w1p, b1p, w2p, b2p = prepare_params(w1, b1, w2, b2)

    out2d = multi_nonlinear_classifier(x2d, w1p, b1p, w2p, b2p)
    out = out2d.reshape(batch, seq, tag_size)
    jax.block_until_ready(out)

    ref = _ref_forward(x2d, w1, b1, w2, b2).reshape(batch, seq, tag_size)
    assert out.shape == (batch, seq, tag_size)
    assert jnp.allclose(out, ref, atol=1e-5, rtol=1e-5)

    print("KERNEL_OK")
</pallas_src>

<mosaic_0001>
module attributes {stable_mosaic.version = 11 : i64} {
  func.func @_mlp_kernel(%arg0: i32, %arg1: memref<8x32xf32, #tpu.memory_space<vmem>>, %arg2: memref<32x128xf32, #tpu.memory_space<vmem>>, %arg3: memref<1x128xf32, #tpu.memory_space<vmem>>, %arg4: memref<128x8xf32, #tpu.memory_space<vmem>>, %arg5: memref<1x8xf32, #tpu.memory_space<vmem>>, %arg6: memref<8x8xf32, #tpu.memory_space<vmem>>) attributes {dimension_semantics = [#tpu.dimension_semantics<parallel>], iteration_bounds = array<i64: 2>, scalar_prefetch = 0 : i64, scratch_operands = 0 : i64, tpu.core_type = #tpu.core_type<tc>, window_params = [{transform_indices = @transform_0, window_bounds = array<i64: 8, 32>}, {pipeline_mode = #tpu.pipeline_mode<synchronous>, transform_indices = @transform_1, window_bounds = array<i64: 32, 128>}, {pipeline_mode = #tpu.pipeline_mode<synchronous>, transform_indices = @transform_2, window_bounds = array<i64: 1, 128>}, {pipeline_mode = #tpu.pipeline_mode<synchronous>, transform_indices = @transform_3, window_bounds = array<i64: 128, 8>}, {pipeline_mode = #tpu.pipeline_mode<synchronous>, transform_indices = @transform_4, window_bounds = array<i64: 1, 8>}, {transform_indices = @transform_5, window_bounds = array<i64: 8, 8>}]} {
    %c0 = arith.constant 0 : index
    %c0_0 = arith.constant 0 : index
    %0 = vector.load %arg1[%c0, %c0_0] : memref<8x32xf32, #tpu.memory_space<vmem>>, vector<8x32xf32>
    %c0_1 = arith.constant 0 : index
    %c0_2 = arith.constant 0 : index
    %1 = vector.load %arg2[%c0_1, %c0_2] : memref<32x128xf32, #tpu.memory_space<vmem>>, vector<32x128xf32>
    %cst = arith.constant dense<0.000000e+00> : vector<8x128xf32>
    %2 = tpu.matmul %0, %1, %cst {dimension_numbers = #tpu.dot_dimension_numbers<[1], [0], [0], [1], [0, 0, 1, 1], [], []>} : vector<8x32xf32>, vector<32x128xf32>, vector<8x128xf32> -> vector<8x128xf32>
    %c0_3 = arith.constant 0 : index
    %c0_4 = arith.constant 0 : index
    %3 = vector.load %arg3[%c0_3, %c0_4] : memref<1x128xf32, #tpu.memory_space<vmem>>, vector<1x128xf32>
    %4 = vector.broadcast %3 : vector<1x128xf32> to vector<8x128xf32>
    %5 = arith.addf %2, %4 : vector<8x128xf32>
    %cst_5 = arith.constant 0.000000e+00 : f32
    %6 = vector.broadcast %cst_5 : f32 to vector<8x128xf32>
    %7 = arith.maximumf %5, %6 : vector<8x128xf32>
    %c0_6 = arith.constant 0 : index
    %c0_7 = arith.constant 0 : index
    %8 = vector.load %arg4[%c0_6, %c0_7] : memref<128x8xf32, #tpu.memory_space<vmem>>, vector<128x8xf32>
    %cst_8 = arith.constant dense<0.000000e+00> : vector<8x8xf32>
    %9 = tpu.matmul %7, %8, %cst_8 {dimension_numbers = #tpu.dot_dimension_numbers<[1], [0], [0], [1], [0, 0, 1, 1], [], []>} : vector<8x128xf32>, vector<128x8xf32>, vector<8x8xf32> -> vector<8x8xf32>
    %c0_9 = arith.constant 0 : index
    %c0_10 = arith.constant 0 : index
    %10 = vector.load %arg5[%c0_9, %c0_10] : memref<1x8xf32, #tpu.memory_space<vmem>>, vector<1x8xf32>
    %11 = vector.broadcast %10 : vector<1x8xf32> to vector<8x8xf32>
    %12 = arith.addf %9, %11 : vector<8x8xf32>
    %c0_11 = arith.constant 0 : index
    %c0_12 = arith.constant 0 : index
    %13 = vector.load %arg6[%c0_11, %c0_12] : memref<8x8xf32, #tpu.memory_space<vmem>>, vector<8x8xf32>
    tpu.vector_store %arg6[%c0_11, %c0_12], %12 {strides = array<i32>} : memref<8x8xf32, #tpu.memory_space<vmem>>, vector<8x8xf32>,
    return
  }
  func.func @transform_0(%arg0: i32) -> (i32, i32) {
    %c0_i32 = arith.constant 0 : i32
    %c0_i32_0 = arith.constant 0 : i32
    return %arg0, %c0_i32 : i32, i32
  }
  func.func @transform_1(%arg0: i32) -> (i32, i32) {
    %c0_i32 = arith.constant 0 : i32
    %c0_i32_0 = arith.constant 0 : i32
    %c0_i32_1 = arith.constant 0 : i32
    return %c0_i32, %c0_i32_0 : i32, i32
  }
  func.func @transform_2(%arg0: i32) -> (i32, i32) {
    %c0_i32 = arith.constant 0 : i32
    %c0_i32_0 = arith.constant 0 : i32
    %c0_i32_1 = arith.constant 0 : i32
    return %c0_i32, %c0_i32_0 : i32, i32
  }
  func.func @transform_3(%arg0: i32) -> (i32, i32) {
    %c0_i32 = arith.constant 0 : i32
    %c0_i32_0 = arith.constant 0 : i32
    %c0_i32_1 = arith.constant 0 : i32
    return %c0_i32, %c0_i32_0 : i32, i32
  }
  func.func @transform_4(%arg0: i32) -> (i32, i32) {
    %c0_i32 = arith.constant 0 : i32
    %c0_i32_0 = arith.constant 0 : i32
    %c0_i32_1 = arith.constant 0 : i32
    return %c0_i32, %c0_i32_0 : i32, i32
  }
  func.func @transform_5(%arg0: i32) -> (i32, i32) {
    %c0_i32 = arith.constant 0 : i32
    %c0_i32_0 = arith.constant 0 : i32
    return %arg0, %c0_i32 : i32, i32
  }
}

</mosaic_0001>

<llo_original>
// kernel: multi_nonlinear_classifier.1
$region0: #{multi_nonlinear_classifier.1}
  #allocation0 [shape = 'u32[]', space=smem, size = 0x4, offset = 0x4, fixed_abs, tag = 'smem constant byte address 0x4 - core index']
  #allocation1 [shape = 'u32[144,128]{1,0:T(1,128)}', space=vmem, size = 0x12000, scoped, tag = 'internal scratch']
  %s0 = inlined_call_operand.hbm [shape: f32[16,32], index: 0, kind: input, shape index: {}]
  %s1 = inlined_call_operand.hbm [shape: f32[32,128], index: 1, kind: input, shape index: {}]
  %s2 = inlined_call_operand.hbm [shape: f32[1,128], index: 2, kind: input, shape index: {}]
  %s3 = inlined_call_operand.hbm [shape: f32[128,8], index: 3, kind: input, shape index: {}]
  %s4 = inlined_call_operand.hbm [shape: f32[1,8], index: 4, kind: input, shape index: {}]
  %s5 = inlined_call_operand.hbm [shape: f32[16,8], index: 5, kind: output, shape index: {}]
  %s6 = sld [smem:[#allocation0]]
  $region73: #{multi_nonlinear_classifier.1} parent=0
    _
  %s8 = ssub.s32 1, %s6
  %s9 = scalar_select 0, %s8, %s6
  $region1: #{multi_nonlinear_classifier.1} parent=0
    #allocation2 [shape = 'u8[8192]{0}', space=vmem, size = 0x2000, scoped, tag = 'input window, operand 0']
    #allocation3 [shape = 's32[2]{0}', space=sflag, size = 0x8, scoped, tag = 'scoped memory for multi_nonlinear_classifier.1']
    #allocation4 [shape = 's32[2]{0}', space=sflag, size = 0x8, scoped, tag = 'scoped memory for multi_nonlinear_classifier.1']
    #allocation5 [shape = 'u8[16384]{0}', space=vmem, size = 0x4000, scoped, tag = 'input window, operand 1, single buffered']
    #allocation6 [shape = 's32[1]{0}', space=sflag, size = 0x4, scoped, tag = 'scoped memory for multi_nonlinear_classifier.1']
    #allocation7 [shape = 'u8[512]{0}', space=vmem, size = 0x400, scoped, tag = 'input window, operand 2, single buffered']
    #allocation8 [shape = 'u8[65536]{0}', space=vmem, size = 0x10000, scoped, tag = 'input window, operand 3, single buffered']
    #allocation9 [shape = 's32[1]{0}', space=sflag, size = 0x4, scoped, tag = 'scoped memory for multi_nonlinear_classifier.1']
    #allocation10 [shape = 'u8[512]{0}', space=vmem, size = 0x400, scoped, tag = 'input window, operand 4, single buffered']
    #allocation11 [shape = 'u8[8192]{0}', space=vmem, size = 0x2000, scoped, tag = 'output window, operand 0']
    %10 = vsyncpa [#allocation3], 0
    %s11 = scalar_lea.sflag [#allocation3], 1
    %12 = vsyncpa %s11, 0
    %13 = vsyncpa [#allocation6], 0
    %14 = vsyncpa [#allocation9], 0
    %15 = vsyncpa [#allocation4], 0
    %s16 = scalar_lea.sflag [#allocation4], 1
    %17 = vsyncpa %s16, 0
    loop: start=0, step=1, limit=4
    $region2: #{multi_nonlinear_classifier.1} parent=1 // loop_pre_header
      _
    $region3: #{multi_nonlinear_classifier.1} parent=1 // loop_header
      %s19 = sphi 0, %s23
      %p20 = scmp.ge.s32.totalorder %s19, 4
      %s29 = sphi 0, %s31
      %s32 = sphi 0, %s29
      %s33 = sphi 0, %s32
      %s49 = sphi 0, %s33
      %s53 = sphi 0, %s53
      %s55 = sphi 0, %s53
      %s56 = sphi 0, %s55
      %s70 = sphi 0, %s56
      %s74 = sphi 0, %s74
      %s76 = sphi 0, %s74
      %s77 = sphi 0, %s76
      %s91 = sphi 0, %s77
      %s95 = sphi 0, %s95
      %s97 = sphi 0, %s95
      %s98 = sphi 0, %s97
      %s112 = sphi 0, %s98
      %s116 = sphi 0, %s116
      %s118 = sphi 0, %s116
      %s119 = sphi 0, %s118
      %s133 = sphi 0, %s119
      %s139 = sphi 0, %s141
      %s142 = sphi 0, %s139
      %s143 = sphi 0, %s142
      %s159 = sphi 0, %s143
    $region4: #{multi_nonlinear_classifier.1} parent=1 // loop_header_branch
      %22 = sbr.rel (%p20) target = $region8
    $region5: #{multi_nonlinear_classifier.1} parent=1 // loop_body
      %s24 = ssub.s32 %s19, 1
      %s25 = ssub.s32 %s19, 2
      %s26 = sadd.s32 %s19, 1
      %s27 = ssub.s32 %s19, %s26
      %p28 = scmp.eq.s32.totalorder %s27, 0
      %s30 = sadd.s32 %s29, 1
      %s31 = scalar_select %p28, %s29, %s30
      %p34 = pneg %p28
      %p35 = scmp.eq.s32.totalorder %s19, 1
      %p36 = por %p34, %p35
      %p37 = scmp.ne.s32.totalorder %s29, %s32
      %p38 = scmp.eq.s32.totalorder %s19, 0
      %p39 = por %p37, %p38
      %p40 = scmp.ne.s32.totalorder %s29, %s32
      %p41 = scmp.eq.s32.totalorder %s24, 1
      %p42 = por %p40, %p41
      %p43 = scmp.ne.s32.totalorder %s32, %s33
      %p44 = scmp.eq.s32.totalorder %s24, 0
      %p45 = por %p43, %p44
      %p46 = scmp.ne.s32.totalorder %s32, %s33
      %p47 = scmp.eq.s32.totalorder %s25, 1
      %p48 = por %p46, %p47
      %p50 = scmp.ne.s32.totalorder %s33, %s49
      %p51 = scmp.eq.s32.totalorder %s25, 0
      %p52 = por %p50, %p51
      %s54 = sadd.s32 %s53, 1
      %p57 = scmp.eq.s32.totalorder %s19, 1
      %p58 = scmp.ne.s32.totalorder %s53, %s55
      %p59 = scmp.eq.s32.totalorder %s19, 0
      %p60 = por %p58, %p59
      %p61 = scmp.ne.s32.totalorder %s53, %s55
      %p62 = scmp.eq.s32.totalorder %s24, 1
      %p63 = por %p61, %p62
      %p64 = scmp.ne.s32.totalorder %s55, %s56
      %p65 = scmp.eq.s32.totalorder %s24, 0
      %p66 = por %p64, %p65
      %p67 = scmp.ne.s32.totalorder %s55, %s56
      %p68 = scmp.eq.s32.totalorder %s25, 1
      %p69 = por %p67, %p68
      %p71 = scmp.ne.s32.totalorder %s56, %s70
      %p72 = scmp.eq.s32.totalorder %s25, 0
      %p73 = por %p71, %p72
      %s75 = sadd.s32 %s74, 1
      %p78 = scmp.eq.s32.totalorder %s19, 1
      %p79 = scmp.ne.s32.totalorder %s74, %s76
      %p80 = scmp.eq.s32.totalorder %s19, 0
      %p81 = por %p79, %p80
      %p82 = scmp.ne.s32.totalorder %s74, %s76
      %p83 = scmp.eq.s32.totalorder %s24, 1
      %p84 = por %p82, %p83
      %p85 = scmp.ne.s32.totalorder %s76, %s77
      %p86 = scmp.eq.s32.totalorder %s24, 0
      %p87 = por %p85, %p86
      %p88 = scmp.ne.s32.totalorder %s76, %s77
      %p89 = scmp.eq.s32.totalorder %s25, 1
      %p90 = por %p88, %p89
      %p92 = scmp.ne.s32.totalorder %s77, %s91
      %p93 = scmp.eq.s32.totalorder %s25, 0
      %p94 = por %p92, %p93
      %s96 = sadd.s32 %s95, 1
      %p99 = scmp.eq.s32.totalorder %s19, 1
      %p100 = scmp.ne.s32.totalorder %s95, %s97
      %p101 = scmp.eq.s32.totalorder %s19, 0
      %p102 = por %p100, %p101
      %p103 = scmp.ne.s32.totalorder %s95, %s97
      %p104 = scmp.eq.s32.totalorder %s24, 1
      %p105 = por %p103, %p104
      %p106 = scmp.ne.s32.totalorder %s97, %s98
      %p107 = scmp.eq.s32.totalorder %s24, 0
      %p108 = por %p106, %p107
      %p109 = scmp.ne.s32.totalorder %s97, %s98
      %p110 = scmp.eq.s32.totalorder %s25, 1
      %p111 = por %p109, %p110
      %p113 = scmp.ne.s32.totalorder %s98, %s112
      %p114 = scmp.eq.s32.totalorder %s25, 0
      %p115 = por %p113, %p114
      %s117 = sadd.s32 %s116, 1
      %p120 = scmp.eq.s32.totalorder %s19, 1
      %p121 = scmp.ne.s32.totalorder %s116, %s118
      %p122 = scmp.eq.s32.totalorder %s19, 0
      %p123 = por %p121, %p122
      %p124 = scmp.ne.s32.totalorder %s116, %s118
      %p125 = scmp.eq.s32.totalorder %s24, 1
      %p126 = por %p124, %p125
      %p127 = scmp.ne.s32.totalorder %s118, %s119
      %p128 = scmp.eq.s32.totalorder %s24, 0
      %p129 = por %p127, %p128
      %p130 = scmp.ne.s32.totalorder %s118, %s119
      %p131 = scmp.eq.s32.totalorder %s25, 1
      %p132 = por %p130, %p131
      %p134 = scmp.ne.s32.totalorder %s119, %s133
      %p135 = scmp.eq.s32.totalorder %s25, 0
      %p136 = por %p134, %p135
      %s137 = ssub.s32 %s19, %s26
      %p138 = scmp.eq.s32.totalorder %s137, 0
      %s140 = sadd.s32 %s139, 1
      %s141 = scalar_select %p138, %s139, %s140
      %p144 = pneg %p138
      %p145 = scmp.eq.s32.totalorder %s19, 1
      %p146 = por %p144, %p145
      %p147 = scmp.ne.s32.totalorder %s139, %s142
      %p148 = scmp.eq.s32.totalorder %s19, 0
      %p149 = por %p147, %p148
      %p150 = scmp.ne.s32.totalorder %s139, %s142
      %p151 = scmp.eq.s32.totalorder %s24, 1
      %p152 = por %p150, %p151
      %p153 = scmp.ne.s32.totalorder %s142, %s143
      %p154 = scmp.eq.s32.totalorder %s24, 0
      %p155 = por %p153, %p154
      %p156 = scmp.ne.s32.totalorder %s142, %s143
      %p157 = scmp.eq.s32.totalorder %s25, 1
      %p158 = por %p156, %p157
      %p160 = scmp.ne.s32.totalorder %s143, %s159
      %p161 = scmp.eq.s32.totalorder %s25, 0
      %p162 = por %p160, %p161
      %p163 = scmp.le.s32.totalorder 1, %s19
      %p164 = scmp.lt.s32.totalorder %s19, 3
      %p165 = pnand %p163, %p164
      %p166 = pneg %p165
      // Predicated region
      $region9: #{multi_nonlinear_classifier.1} parent=5 // pred_check
        _
      $region10: #{multi_nonlinear_classifier.1} parent=5 // pred_check_branch
        %168 = sbr.rel (%p165) target = $region12
      $region11: #{multi_nonlinear_classifier.1} parent=5 // pred_region
        %s169 = ssub.s32 %s19, 1
        // Predicated region
        $region13: #{multi_nonlinear_classifier.1} parent=11 // pred_check
          %p170 = pneg %p66
        $region14: #{multi_nonlinear_classifier.1} parent=11 // pred_check_branch
          %172 = sbr.rel (%p170) target = $region16
        $region15: #{multi_nonlinear_classifier.1} parent=11 // pred_region
          %s174 = ssub.s32 512, 512
          %175 = vsyncadd [#allocation6], %s174
          %s176 = sshll.u32 [#allocation5], 4
          %s177 = int_to_ptr.vmem [resolvable:$true] %s176
          %182 = dma.hbm_to_vmem [thread:$0]  %s1, 512, %s177, [#allocation6], 128, 128, 8
        $region16: #{multi_nonlinear_classifier.1} parent=11 // pred_fallthru
          _
        // Predicated region
        $region17: #{multi_nonlinear_classifier.1} parent=11 // pred_check
          %p183 = pneg %p87
        $region18: #{multi_nonlinear_classifier.1} parent=11 // pred_check_branch
          %185 = sbr.rel (%p183) target = $region20
        $region19: #{multi_nonlinear_classifier.1} parent=11 // pred_region
          %s187 = ssub.s32 16, 16
          %188 = vsyncadd [#allocation6], %s187
          %s190 = sshll.u32 [#allocation7], 4
          %s191 = int_to_ptr.vmem [resolvable:$true] %s190
          %193 = dma.hbm_to_vmem [thread:$0]  %s2, 16, %s191, [#allocation6]
        $region20: #{multi_nonlinear_classifier.1} parent=11 // pred_fallthru
          _
        // Predicated region
        $region21: #{multi_nonlinear_classifier.1} parent=11 // pred_check
          %p194 = pneg %p108
        $region22: #{multi_nonlinear_classifier.1} parent=11 // pred_check_branch
          %196 = sbr.rel (%p194) target = $region24
        $region23: #{multi_nonlinear_classifier.1} parent=11 // pred_region
          %s198 = ssub.s32 2048, 2048
          %199 = vsyncadd [#allocation9], %s198
          %s200 = sshll.u32 [#allocation8], 4
          %s201 = int_to_ptr.vmem [resolvable:$true] %s200
          %206 = dma.hbm_to_vmem [thread:$0]  %s3, 2048, %s201, [#allocation9], 128, 128, 8
        $region24: #{multi_nonlinear_classifier.1} parent=11 // pred_fallthru
          _
        // Predicated region
        $region25: #{multi_nonlinear_classifier.1} parent=11 // pred_check
          %p207 = pneg %p129
        $region26: #{multi_nonlinear_classifier.1} parent=11 // pred_check_branch
          %209 = sbr.rel (%p207) target = $region28
        $region27: #{multi_nonlinear_classifier.1} parent=11 // pred_region
          %s211 = ssub.s32 16, 16
          %212 = vsyncadd [#allocation9], %s211
          %s214 = sshll.u32 [#allocation10], 4
          %s215 = int_to_ptr.vmem [resolvable:$true] %s214
          %217 = dma.hbm_to_vmem [thread:$0]  %s4, 16, %s215, [#allocation9]
        $region28: #{multi_nonlinear_classifier.1} parent=11 // pred_fallthru
          _
      $region12: #{multi_nonlinear_classifier.1} parent=5 // pred_fallthru
        _
      %p218 = scmp.lt.s32.totalorder %s19, 2
      // Predicated region
      $region29: #{multi_nonlinear_classifier.1} parent=5 // pred_check
        %p219 = pneg %p218
      $region30: #{multi_nonlinear_classifier.1} parent=5 // pred_check_branch
        %221 = sbr.rel (%p219) target = $region32
      $region31: #{multi_nonlinear_classifier.1} parent=5 // pred_region
        // Predicated region
        $region33: #{multi_nonlinear_classifier.1} parent=31 // pred_check
          %p222 = pneg %p39
        $region34: #{multi_nonlinear_classifier.1} parent=31 // pred_check_branch
          %224 = sbr.rel (%p222) target = $region36
        $region35: #{multi_nonlinear_classifier.1} parent=31 // pred_region
          %s225 = sand.u32 %s29, 1
          %s226 = scalar_lea.sflag [#allocation3], %s225
          %s227 = sand.u32 %s29, 1
          %s228 = smul.addr %s227, 8
          %s229 = scalar_lea.vmem [#allocation2], %s228
          %s231 = ssub.s32 128, 128
          %232 = vsyncadd %s226, %s231
          %s233 = smul.addr %s19, 128
          %s234 = scalar_lea.hbm %s0, %s233
          %s236 = sshll.u32 %s229, 4
          %s237 = int_to_ptr.vmem [resolvable:$true] %s236
          %239 = dma.hbm_to_vmem [thread:$0]  %s234, 128, %s237, %s226
        $region36: #{multi_nonlinear_classifier.1} parent=31 // pred_fallthru
          _
      $region32: #{multi_nonlinear_classifier.1} parent=5 // pred_fallthru
        _
      %p240 = scmp.le.s32.totalorder 1, %s19
      %p241 = scmp.lt.s32.totalorder %s19, 3
      %p242 = pnand %p240, %p241
      %p243 = pneg %p242
      // Predicated region
      $region37: #{multi_nonlinear_classifier.1} parent=5 // pred_check
        _
      $region38: #{multi_nonlinear_classifier.1} parent=5 // pred_check_branch
        %245 = sbr.rel (%p242) target = $region40
      $region39: #{multi_nonlinear_classifier.1} parent=5 // pred_region
        %s246 = ssub.s32 %s19, 1
        %s247 = sand.u32 %s32, 1
        %s248 = scalar_lea.sflag [#allocation3], %s247
        %s249 = sand.u32 %s32, 1
        %s250 = smul.addr %s249, 8
        %s251 = scalar_lea.vmem [#allocation2], %s250
        // Predicated region
        $region41: #{multi_nonlinear_classifier.1} parent=39 // pred_check
          %p252 = pneg %p45
        $region42: #{multi_nonlinear_classifier.1} parent=39 // pred_check_branch
          %254 = sbr.rel (%p252) target = $region44
        $region43: #{multi_nonlinear_classifier.1} parent=39 // pred_region
          %255 = dma.done %s248, 128
        $region44: #{multi_nonlinear_classifier.1} parent=39 // pred_fallthru
          _
        // Predicated region
        $region45: #{multi_nonlinear_classifier.1} parent=39 // pred_check
          %p256 = pneg %p66
        $region46: #{multi_nonlinear_classifier.1} parent=39 // pred_check_branch
          %258 = sbr.rel (%p256) target = $region48
        $region47: #{multi_nonlinear_classifier.1} parent=39 // pred_region
          %259 = dma.done [#allocation6], 512
        $region48: #{multi_nonlinear_classifier.1} parent=39 // pred_fallthru
          _
        // Predicated region
        $region49: #{multi_nonlinear_classifier.1} parent=39 // pred_check
          %p260 = pneg %p87
        $region50: #{multi_nonlinear_classifier.1} parent=39 // pred_check_branch
          %262 = sbr.rel (%p260) target = $region52
        $region51: #{multi_nonlinear_classifier.1} parent=39 // pred_region
          %263 = dma.done [#allocation6], 16
        $region52: #{multi_nonlinear_classifier.1} parent=39 // pred_fallthru
          _
        // Predicated region
        $region53: #{multi_nonlinear_classifier.1} parent=39 // pred_check
          %p264 = pneg %p108
        $region54: #{multi_nonlinear_classifier.1} parent=39 // pred_check_branch
          %266 = sbr.rel (%p264) target = $region56
        $region55: #{multi_nonlinear_classifier.1} parent=39 // pred_region
          %267 = dma.done [#allocation9], 2048
        $region56: #{multi_nonlinear_classifier.1} parent=39 // pred_fallthru
          _
        // Predicated region
        $region57: #{multi_nonlinear_classifier.1} parent=39 // pred_check
          %p268 = pneg %p129
        $region58: #{multi_nonlinear_classifier.1} parent=39 // pred_check_branch
          %270 = sbr.rel (%p268) target = $region60
        $region59: #{multi_nonlinear_classifier.1} parent=39 // pred_region
          %271 = dma.done [#allocation9], 16
        $region60: #{multi_nonlinear_classifier.1} parent=39 // pred_fallthru
          _
        %s272 = sand.u32 %s32, 1
        %s273 = scalar_lea.sflag [#allocation3], %s272
        %s274 = sand.u32 %s32, 1
        %s275 = smul.addr %s274, 8
        %s276 = scalar_lea.vmem [#allocation2], %s275
        %p277 = pneg %p45
        %p278 = pneg %p42
        %p279 = pneg %p66
        %p280 = pneg %p63
        %p281 = pneg %p87
        %p282 = pneg %p84
        %p283 = pneg %p108
        %p284 = pneg %p105
        %p285 = pneg %p129
        %p286 = pneg %p126
        %p287 = pneg %p155
        %p288 = pneg %p152
        %s289 = sand.u32 %s142, 1
        %s290 = scalar_lea.sflag [#allocation4], %s289
        %s291 = sand.u32 %s142, 1
        %s292 = smul.addr %s291, 8
        %s293 = scalar_lea.vmem [#allocation11], %s292
        %v294 = vld [vmem:[%s251] sm:$0xff]
        %v295 = vld [vmem:[#allocation5] sm:$0xff]
        %v296 = vld [vmem:[#allocation5 + $0x8] sm:$0xff]
        %v297 = vld [vmem:[#allocation5 + $0x10] sm:$0xff]
        %v298 = vld [vmem:[#allocation5 + $0x18] sm:$0xff]
        %v299 = vld [vmem:[#allocation7] sm:$0x1]
        %v301 = vlaneseq
        %v302 = vshrl.u32 %v301, 7
        %v303 = vsub.s32 0, %v302
        %v304 = vrot.slane %v299, %v303
        %vm306 = vcmask 261120
        %v308 = vsel %vm306, %v294, 0
        %310 = vmatprep.subr.mxu0 0.0
        %311 = vmatpush1.msra.mxu0 %v295
        %312 = vmatprep.subr.mxu0 0.0
        %313 = vmatpush1.msra.mxu0 %v296
        %314 = vmatprep.subr.mxu0 0.0
        %315 = vmatpush1.msra.mxu0 %v297
        %316 = vmatprep.subr.mxu0 0.0
        %317 = vmatpush1.msra.mxu0 %v298
        %318 = vmatprep.subr.mxu0 0.0
        %319 = vmatpush1.msra.mxu0 0.0
        %320 = vmatprep.subr.mxu0 0.0
        %321 = vmatpush1.msra.mxu0 0.0
        %322 = vmatprep.subr.mxu0 0.0
        %323 = vmatpush1.msra.mxu0 0.0
        %324 = vmatprep.subr.mxu0 0.0
        %325 = vmatpush1.msra.mxu0 0.0
        %326 = vmatprep.subr.mxu0 0.0
        %327 = vmatpush1.msra.mxu0 0.0
        %328 = vmatprep.subr.mxu0 0.0
        %329 = vmatpush1.msra.mxu0 0.0
        %330 = vmatprep.subr.mxu0 0.0
        %331 = vmatpush1.msra.mxu0 0.0
        %332 = vmatprep.subr.mxu0 0.0
        %333 = vmatpush1.msra.mxu0 0.0
        %334 = vmatprep.subr.mxu0 0.0
        %335 = vmatpush1.msra.mxu0 0.0
        %336 = vmatprep.subr.mxu0 0.0
        %337 = vmatpush1.msra.mxu0 0.0
        %338 = vmatprep.subr.mxu0 0.0
        %339 = vmatpush1.msra.mxu0 0.0
        %340 = vmatprep.subr.mxu0 0.0
        %341 = vmatpush1.msra.mxu0 0.0
        %342 = vmatprep.subr.mxu0 0.0
        %343 = vmatpush1.msra.mxu0 0.0
        %344 = vmatprep.subr.mxu0 0.0
        %345 = vmatpush1.msra.mxu0 0.0
        %346 = vmatprep.subr.mxu0 0.0
        %347 = vmatpush1.msra.mxu0 0.0
        %348 = vmatprep.subr.mxu0 0.0
        %349 = vmatpush1.msra.mxu0 0.0
        %350 = vmatprep.subr.mxu0 0.0
        %351 = vmatpush1.msra.mxu0 0.0
        %352 = vmatprep.subr.mxu0 0.0
        %353 = vmatpush1.msra.mxu0 0.0
        %354 = vmatprep.subr.mxu0 0.0
        %355 = vmatpush1.msra.mxu0 0.0
        %356 = vmatprep.subr.mxu0 0.0
        %357 = vmatpush1.msra.mxu0 0.0
        %358 = vmatprep.subr.mxu0 0.0
        %359 = vmatpush1.msra.mxu0 0.0
        %360 = vmatprep.subr.mxu0 0.0
        %361 = vmatpush1.msra.mxu0 0.0
        %362 = vmatprep.subr.mxu0 0.0
        %363 = vmatpush1.msra.mxu0 0.0
        %364 = vmatprep.subr.mxu0 0.0
        %365 = vmatpush1.msra.mxu0 0.0
        %366 = vmatprep.subr.mxu0 0.0
        %367 = vmatpush1.msra.mxu0 0.0
        %368 = vmatprep.subr.mxu0 0.0
        %369 = vmatpush1.msra.mxu0 0.0
        %370 = vmatprep.subr.mxu0 0.0
        %371 = vmatpush1.msra.mxu0 0.0
        %372 = vmatprep.subr.mxu0 0.0
        %373 = vmatpush1.msra.mxu0 0.0
        %374 = vmatprep.mubr.f32.mxu0 0.0
        %375 = vmatmul.mubr.f32.gmra.mrb[0].mxu0 %v308
        %v376 = vpop.f32.mrb[0].mxu0
        %v377 = vadd.f32 %v304, %v376
        %v378 = vpop.f32.mrb[0].mxu0
        %379 = vdwg.mxu0
        %v380 = vmax.f32 %v377, 0.0
        %v381 = vld [vmem:[#allocation8] sm:$0xff]
        %v382 = vld [vmem:[#allocation8 + $0x8] sm:$0xff]
        %v383 = vld [vmem:[#allocation8 + $0x10] sm:$0xff]
        %v384 = vld [vmem:[#allocation8 + $0x18] sm:$0xff]
        %v385 = vld [vmem:[#allocation8 + $0x20] sm:$0xff]
        %v386 = vld [vmem:[#allocation8 + $0x28] sm:$0xff]
        %v387 = vld [vmem:[#allocation8 + $0x30] sm:$0xff]
        %v388 = vld [vmem:[#allocation8 + $0x38] sm:$0xff]
        %v389 = vld [vmem:[#allocation8 + $0x40] sm:$0xff]
        %v390 = vld [vmem:[#allocation8 + $0x48] sm:$0xff]
        %v391 = vld [vmem:[#allocation8 + $0x50] sm:$0xff]
        %v392 = vld [vmem:[#allocation8 + $0x58] sm:$0xff]
        %v393 = vld [vmem:[#allocation8 + $0x60] sm:$0xff]
        %v394 = vld [vmem:[#allocation8 + $0x68] sm:$0xff]
        %v395 = vld [vmem:[#allocation8 + $0x70] sm:$0xff]
        %v396 = vld [vmem:[#allocation8 + $0x78] sm:$0xff]
        %v397 = vld [vmem:[#allocation10] sm:$0x1]
        %v399 = vlaneseq
        %v400 = vshrl.u32 %v399, 7
        %v401 = vsub.s32 0, %v400
        %v402 = vrot.slane %v397, %v401
        %404 = vmatprep.subr.mxu0 0.0
        %405 = vmatpush1.msra.mxu0 %v381
        %406 = vmatprep.subr.mxu0 0.0
        %407 = vmatpush1.msra.mxu0 %v382
        %408 = vmatprep.subr.mxu0 0.0
        %409 = vmatpush1.msra.mxu0 %v383
        %410 = vmatprep.subr.mxu0 0.0
        %411 = vmatpush1.msra.mxu0 %v384
        %412 = vmatprep.subr.mxu0 0.0
        %413 = vmatpush1.msra.mxu0 %v385
        %414 = vmatprep.subr.mxu0 0.0
        %415 = vmatpush1.msra.mxu0 %v386
        %416 = vmatprep.subr.mxu0 0.0
        %417 = vmatpush1.msra.mxu0 %v387
        %418 = vmatprep.subr.mxu0 0.0
        %419 = vmatpush1.msra.mxu0 %v388
        %420 = vmatprep.subr.mxu0 0.0
        %421 = vmatpush1.msra.mxu0 %v389
        %422 = vmatprep.subr.mxu0 0.0
        %423 = vmatpush1.msra.mxu0 %v390
        %424 = vmatprep.subr.mxu0 0.0
        %425 = vmatpush1.msra.mxu0 %v391
        %426 = vmatprep.subr.mxu0 0.0
        %427 = vmatpush1.msra.mxu0 %v392
        %428 = vmatprep.subr.mxu0 0.0
        %429 = vmatpush1.msra.mxu0 %v393
        %430 = vmatprep.subr.mxu0 0.0
        %431 = vmatpush1.msra.mxu0 %v394
        %432 = vmatprep.subr.mxu0 0.0
        %433 = vmatpush1.msra.mxu0 %v395
        %434 = vmatprep.subr.mxu0 0.0
        %435 = vmatpush1.msra.mxu0 %v396
        %436 = vmatprep.subr.mxu0 0.0
        %437 = vmatpush1.msra.mxu0 0.0
        %438 = vmatprep.subr.mxu0 0.0
        %439 = vmatpush1.msra.mxu0 0.0
        %440 = vmatprep.subr.mxu0 0.0
        %441 = vmatpush1.msra.mxu0 0.0
        %442 = vmatprep.subr.mxu0 0.0
        %443 = vmatpush1.msra.mxu0 0.0
        %444 = vmatprep.subr.mxu0 0.0
        %445 = vmatpush1.msra.mxu0 0.0
        %446 = vmatprep.subr.mxu0 0.0
        %447 = vmatpush1.msra.mxu0 0.0
        %448 = vmatprep.subr.mxu0 0.0
        %449 = vmatpush1.msra.mxu0 0.0
        %450 = vmatprep.subr.mxu0 0.0
        %451 = vmatpush1.msra.mxu0 0.0
        %452 = vmatprep.subr.mxu0 0.0
        %453 = vmatpush1.msra.mxu0 0.0
        %454 = vmatprep.subr.mxu0 0.0
        %455 = vmatpush1.msra.mxu0 0.0
        %456 = vmatprep.subr.mxu0 0.0
        %457 = vmatpush1.msra.mxu0 0.0
        %458 = vmatprep.subr.mxu0 0.0
        %459 = vmatpush1.msra.mxu0 0.0
        %460 = vmatprep.subr.mxu0 0.0
        %461 = vmatpush1.msra.mxu0 0.0
        %462 = vmatprep.subr.mxu0 0.0
        %463 = vmatpush1.msra.mxu0 0.0
        %464 = vmatprep.subr.mxu0 0.0
        %465 = vmatpush1.msra.mxu0 0.0
        %466 = vmatprep.subr.mxu0 0.0
        %467 = vmatpush1.msra.mxu0 0.0
        %468 = vmatprep.mubr.f32.mxu0 0.0
        %469 = vmatmul.mubr.f32.gmra.mrb[0].mxu0 %v380
        %v470 = vpop.f32.mrb[0].mxu0
        %v471 = vadd.f32 %v402, %v470
        %v472 = vpop.f32.mrb[0].mxu0
        %473 = vdwg.mxu0
        %vm474 = vcmask 64512
        %475 = vst.msk [vmem:[%s293] sm:$0xff] %vm474, %v471
        %s476 = sand.u32 %s142, 1
        %s477 = scalar_lea.sflag [#allocation4], %s476
        %s478 = sand.u32 %s142, 1
        %s479 = smul.addr %s478, 8
        %s480 = scalar_lea.vmem [#allocation11], %s479
        // Predicated region
        $region61: #{multi_nonlinear_classifier.1} parent=39 // pred_check
          %p481 = pneg %p152
        $region62: #{multi_nonlinear_classifier.1} parent=39 // pred_check_branch
          %483 = sbr.rel (%p481) target = $region64
        $region63: #{multi_nonlinear_classifier.1} parent=39 // pred_region
          %s485 = ssub.s32 128, 128
          %486 = vsyncadd %s477, %s485
          %s487 = smul.addr %s24, 128
          %s488 = scalar_lea.hbm %s5, %s487
          %s490 = sshll.u32 %s480, 4
          %s491 = int_to_ptr.vmem [resolvable:$true] %s490
          %493 = dma.vmem_to_hbm [thread:$0]  %s491, 128, %s488, %s477
        $region64: #{multi_nonlinear_classifier.1} parent=39 // pred_fallthru
          _
      $region40: #{multi_nonlinear_classifier.1} parent=5 // pred_fallthru
        _
      %p494 = scmp.le.s32.totalorder 2, %s19
      // Predicated region
      $region65: #{multi_nonlinear_classifier.1} parent=5 // pred_check
        %p495 = pneg %p494
      $region66: #{multi_nonlinear_classifier.1} parent=5 // pred_check_branch
        %497 = sbr.rel (%p495) target = $region68
      $region67: #{multi_nonlinear_classifier.1} parent=5 // pred_region
        %s498 = ssub.s32 %s19, 2
        // Predicated region
        $region69: #{multi_nonlinear_classifier.1} parent=67 // pred_check
          %p499 = pneg %p158
        $region70: #{multi_nonlinear_classifier.1} parent=67 // pred_check_branch
          %501 = sbr.rel (%p499) target = $region72
        $region71: #{multi_nonlinear_classifier.1} parent=67 // pred_region
          %s502 = sand.u32 %s143, 1
          %s503 = scalar_lea.sflag [#allocation4], %s502
          %s504 = sand.u32 %s143, 1
          %s505 = smul.addr %s504, 8
          %s506 = scalar_lea.vmem [#allocation11], %s505
          %507 = dma.done %s503, 128
        $region72: #{multi_nonlinear_classifier.1} parent=67 // pred_fallthru
          _
      $region68: #{multi_nonlinear_classifier.1} parent=5 // pred_fallthru
        _
    $region6: #{multi_nonlinear_classifier.1} parent=1 // loop_footer
      %s23 = sadd.s32 1, %s19
    $region7: #{multi_nonlinear_classifier.1} parent=1 // loop_footer_branch
      %18 = sbr.rel target = $region3
    $region8: #{multi_nonlinear_classifier.1} parent=1 // loop_exit
      _
    %508 = vsyncpa [#allocation3], 1
    %s509 = scalar_lea.sflag [#allocation3], 1
    %510 = vsyncpa %s509, 1
    %511 = vsyncpa [#allocation6], 1
    %512 = vsyncpa [#allocation9], 1
    %513 = vsyncpa [#allocation4], 1
    %s514 = scalar_lea.sflag [#allocation4], 1
    %515 = vsyncpa %s514, 1

</llo_original>
